<compile_context>
chip_gen: v5e
topology: v5e:2x2
jax: 0.10.0
libtpu: 0.0.40
codegen_flags: <defaults>
</compile_context>

<pallas_src>
import math

import jax
import jax.numpy as jnp
from jax.experimental import pallas as pl
from jax.experimental.pallas import tpu as pltpu


def _eigen_norm_kernel(x_ref, l_ref, vinvT_ref, vT_ref, o_ref):
    # x_ref     : (Rb, N) activation dtype -- streamed rows of `data` (flattened ..., C)
    # l_ref     : (Rb, N) f32  -- 10**gain tiled over channels (VMEM-resident)
    # vinvT_ref : (N, N)  bf16 -- Vinv^T (VMEM-resident)
    # vT_ref    : (N, N)  bf16 -- V^T    (VMEM-resident)
    # o_ref     : (Rb, N) activation dtype -- streamed output rows
    x = x_ref[...].astype(jnp.bfloat16)                        # VPU cast, hidden under DMA
    alpha = jnp.dot(x, vinvT_ref[...],
                    preferred_element_type=jnp.float32)        # decompose: data @ Vinv^T
    scaled = (alpha * l_ref[...]).astype(jnp.bfloat16)         # per-channel eigen gain
    o_ref[...] = jnp.dot(scaled, vT_ref[...],
                         preferred_element_type=jnp.float32
                         ).astype(o_ref.dtype)                 # reconstruct: @ V^T


def _pick_row_tile(n_rows, n_channels, target):
    """Row tile: multiple of lcm(C, 8) (channel alignment + sublane tiling)."""
    base = (n_channels * 8) // math.gcd(n_channels, 8)
    if n_rows <= target:
        return ((n_rows + base - 1) // base) * base            # single (possibly padded) tile
    return max(base, (target // base) * base)                  # target=1024 keeps M a multiple
                                                               # of 256 for v6e when C | 256


def eigen_norm_forward(data, V, Vinv, gain, *, row_tile=1024):
    """Inference EigenNorm.forward: ((data @ Vinv^T) * 10**gain) @ V^T.

    data: (..., C, N); V, Vinv: (N, N); gain: (C, N).  Returns data.shape/dtype.
    """
    orig_shape = data.shape
    out_dtype = data.dtype
    C, N = gain.shape
    assert orig_shape[-1] == N and orig_shape[-2] == C

    x_rows = data.reshape(-1, N)                               # free row-major reshape
    R = x_rows.shape[0]

    Rb = _pick_row_tile(R, C, row_tile)
    num_tiles = pl.cdiv(R, Rb)
    R_pad = num_tiles * Rb
    if R_pad != R:                                             # ragged last tile -> zero-pad rows
        x_rows = jnp.pad(x_rows, ((0, R_pad - R), (0, 0)))

    # Exponent math stays in f32 regardless of activation dtype.
    L = 10.0 ** gain.astype(jnp.float32)                       # (C, N)
    # Tile once to a single row block (Rb % C == 0, tiles start at multiples of C).
    l_tile = jnp.tile(L, (Rb // C, 1))                         # (Rb, N) f32, VMEM-resident

    # Operator-side transposes/casts: tiny (N, N), done once per call.
    vinvT = Vinv.T.astype(jnp.bfloat16)
    vT = V.T.astype(jnp.bfloat16)

    x_bytes = x_rows.dtype.itemsize
    o_bytes = jnp.dtype(out_dtype).itemsize
    vmem_needed = (2 * Rb * N * (x_bytes + o_bytes)            # double-buffered x / out tiles
                   + 2 * Rb * N * 4                            # resident gain tile
                   + 2 * 2 * N * N * 2)                        # resident V^T / Vinv^T
    vmem_limit = int(min(max(2 * vmem_needed, 32 << 20), 64 << 20))

    out = pl.pallas_call(
        _eigen_norm_kernel,
        out_shape=jax.ShapeDtypeStruct((R_pad, N), out_dtype),
        grid=(num_tiles,),
        in_specs=[
            pl.BlockSpec((Rb, N), lambda i: (i, 0)),           # x rows      (streamed)
            pl.BlockSpec((Rb, N), lambda i: (0, 0)),           # gain tile   (resident)
            pl.BlockSpec((N, N), lambda i: (0, 0)),            # Vinv^T      (resident)
            pl.BlockSpec((N, N), lambda i: (0, 0)),            # V^T         (resident)
        ],
        out_specs=pl.BlockSpec((Rb, N), lambda i: (i, 0)),
        compiler_params=pltpu.CompilerParams(
            dimension_semantics=("parallel",),                 # v7x: split row tiles across TCs
            vmem_limit_bytes=vmem_limit),
    )(x_rows, l_tile, vinvT, vT)

    if R_pad != R:
        out = out[:R]
    return out.reshape(orig_shape)


if __name__ == "__main__":
    key = jax.random.PRNGKey(0)
    k1, k2, k3 = jax.random.split(key, 3)

    B, C, N = 8, 4, 128   # batch, n_channels, n_dofs (small demo sizes)

    # Synthetic operator (stands in for setup()/from_npz()); reset_operator(): Vinv = V.T.
    A = jax.random.normal(k1, (N, N), jnp.float32)
    V, _ = jnp.linalg.qr(A)                 # orthogonal eigenvector matrix
    V = V.astype(jnp.float32)
    Vinv = V.T

    # Running-stats buffer `gain` (C, N); forward applies L = 10**gain.
    gain = jax.random.uniform(k2, (C, N), jnp.float32, minval=-0.5, maxval=0.5)

    data = jax.random.normal(k3, (B, C, N), jnp.float32)

    out = jax.block_until_ready(eigen_norm_forward(data, V, Vinv, gain))
    assert out.shape == (B, C, N), out.shape
    assert out.dtype == data.dtype, out.dtype

    L = 10.0 ** gain

    # (a) Mirror of the kernel's bf16-operand math (f32 accumulation) -> tight check.
    xb = data.reshape(-1, N).astype(jnp.bfloat16).astype(jnp.float32)
    vinvT32 = Vinv.T.astype(jnp.bfloat16).astype(jnp.float32)
    vT32 = V.T.astype(jnp.bfloat16).astype(jnp.float32)
    l_rows = jnp.broadcast_to(L, (B, C, N)).reshape(-1, N)
    alpha_b = jnp.dot(xb, vinvT32, precision=jax.lax.Precision.HIGHEST)
    scaled_b = (alpha_b * l_rows).astype(jnp.bfloat16).astype(jnp.float32)
    ref_mirror = jnp.dot(scaled_b, vT32,
                         precision=jax.lax.Precision.HIGHEST).reshape(B, C, N)
    assert jnp.allclose(out, ref_mirror, rtol=1e-2, atol=1e-2), \
        float(jnp.max(jnp.abs(out - ref_mirror)))

    # (b) Full-f32 mirror of the PyTorch forward -> slack covers bf16 operand rounding.
    alpha_ref = jnp.einsum('jk,bck->bcj', Vinv, data)
    ref_f32 = jnp.einsum('bcj,ij,cj->bci', alpha_ref, V, L)
    assert jnp.allclose(out, ref_f32, rtol=5e-2, atol=5e-2), \
        float(jnp.max(jnp.abs(out - ref_f32)))

    print("KERNEL_OK")
</pallas_src>

<mosaic_0001>
module attributes {stable_mosaic.version = 11 : i64} {
  func.func @_eigen_norm_kernel(%arg0: i32, %arg1: memref<32x128xf32, #tpu.memory_space<vmem>>, %arg2: memref<32x128xf32, #tpu.memory_space<vmem>>, %arg3: memref<128x128xbf16, #tpu.memory_space<vmem>>, %arg4: memref<128x128xbf16, #tpu.memory_space<vmem>>, %arg5: memref<32x128xf32, #tpu.memory_space<vmem>>) attributes {dimension_semantics = [#tpu.dimension_semantics<parallel>], iteration_bounds = array<i64: 1>, scalar_prefetch = 0 : i64, scratch_operands = 0 : i64, tpu.core_type = #tpu.core_type<tc>, window_params = [{transform_indices = @transform_0, window_bounds = array<i64: 32, 128>}, {pipeline_mode = #tpu.pipeline_mode<synchronous>, transform_indices = @transform_1, window_bounds = array<i64: 32, 128>}, {pipeline_mode = #tpu.pipeline_mode<synchronous>, transform_indices = @transform_2, window_bounds = array<i64: 128, 128>}, {pipeline_mode = #tpu.pipeline_mode<synchronous>, transform_indices = @transform_3, window_bounds = array<i64: 128, 128>}, {transform_indices = @transform_4, window_bounds = array<i64: 32, 128>}]} {
    %c0 = arith.constant 0 : index
    %c0_0 = arith.constant 0 : index
    %0 = vector.load %arg1[%c0, %c0_0] : memref<32x128xf32, #tpu.memory_space<vmem>>, vector<32x128xf32>
    %1 = arith.truncf %0 : vector<32x128xf32> to vector<32x128xbf16>
    %c0_1 = arith.constant 0 : index
    %c0_2 = arith.constant 0 : index
    %2 = vector.load %arg3[%c0_1, %c0_2] : memref<128x128xbf16, #tpu.memory_space<vmem>>, vector<128x128xbf16>
    %cst = arith.constant dense<0.000000e+00> : vector<32x128xf32>
    %3 = tpu.matmul %1, %2, %cst {dimension_numbers = #tpu.dot_dimension_numbers<[1], [0], [0], [1], [0, 0, 1, 1], [], []>} : vector<32x128xbf16>, vector<128x128xbf16>, vector<32x128xf32> -> vector<32x128xf32>
    %c0_3 = arith.constant 0 : index
    %c0_4 = arith.constant 0 : index
    %4 = vector.load %arg2[%c0_3, %c0_4] : memref<32x128xf32, #tpu.memory_space<vmem>>, vector<32x128xf32>
    %5 = arith.mulf %3, %4 : vector<32x128xf32>
    %6 = arith.truncf %5 : vector<32x128xf32> to vector<32x128xbf16>
    %c0_5 = arith.constant 0 : index
    %c0_6 = arith.constant 0 : index
    %7 = vector.load %arg4[%c0_5, %c0_6] : memref<128x128xbf16, #tpu.memory_space<vmem>>, vector<128x128xbf16>
    %cst_7 = arith.constant dense<0.000000e+00> : vector<32x128xf32>
    %8 = tpu.matmul %6, %7, %cst_7 {dimension_numbers = #tpu.dot_dimension_numbers<[1], [0], [0], [1], [0, 0, 1, 1], [], []>} : vector<32x128xbf16>, vector<128x128xbf16>, vector<32x128xf32> -> vector<32x128xf32>
    %c0_8 = arith.constant 0 : index
    %c0_9 = arith.constant 0 : index
    %9 = vector.load %arg5[%c0_8, %c0_9] : memref<32x128xf32, #tpu.memory_space<vmem>>, vector<32x128xf32>
    tpu.vector_store %arg5[%c0_8, %c0_9], %8 {strides = array<i32>} : memref<32x128xf32, #tpu.memory_space<vmem>>, vector<32x128xf32>,
    return
  }
  func.func @transform_0(%arg0: i32) -> (i32, i32) {
    %c0_i32 = arith.constant 0 : i32
    %c0_i32_0 = arith.constant 0 : i32
    return %arg0, %c0_i32 : i32, i32
  }
  func.func @transform_1(%arg0: i32) -> (i32, i32) {
    %c0_i32 = arith.constant 0 : i32
    %c0_i32_0 = arith.constant 0 : i32
    %c0_i32_1 = arith.constant 0 : i32
    return %c0_i32, %c0_i32_0 : i32, i32
  }
  func.func @transform_2(%arg0: i32) -> (i32, i32) {
    %c0_i32 = arith.constant 0 : i32
    %c0_i32_0 = arith.constant 0 : i32
    %c0_i32_1 = arith.constant 0 : i32
    return %c0_i32, %c0_i32_0 : i32, i32
  }
  func.func @transform_3(%arg0: i32) -> (i32, i32) {
    %c0_i32 = arith.constant 0 : i32
    %c0_i32_0 = arith.constant 0 : i32
    %c0_i32_1 = arith.constant 0 : i32
    return %c0_i32, %c0_i32_0 : i32, i32
  }
  func.func @transform_4(%arg0: i32) -> (i32, i32) {
    %c0_i32 = arith.constant 0 : i32
    %c0_i32_0 = arith.constant 0 : i32
    return %arg0, %c0_i32 : i32, i32
  }
}

</mosaic_0001>

<llo_original>
// kernel: tpu_custom_call.1
$region0: #{tpu_custom_call.1}
  #allocation0 [shape = 'u32[]', space=smem, size = 0x4, offset = 0x4, fixed_abs, tag = 'smem constant byte address 0x4 - core index']
  #allocation1 [shape = 'u32[72,128]{1,0:T(1,128)}', space=vmem, size = 0x9000, scoped, tag = 'internal scratch']
  %s0 = inlined_call_operand.hbm [shape: f32[32,128], index: 0, kind: input, shape index: {}]
  %s1 = inlined_call_operand.hbm [shape: f32[32,128], index: 1, kind: input, shape index: {}]
  %s2 = inlined_call_operand.hbm [shape: bf16[128,128], index: 2, kind: input, shape index: {}]
  %s3 = inlined_call_operand.hbm [shape: bf16[128,128], index: 3, kind: input, shape index: {}]
  %s4 = inlined_call_operand.hbm [shape: f32[32,128], index: 4, kind: output, shape index: {}]
  %s5 = sld [smem:[#allocation0]]
  $region42: #{tpu_custom_call.1} parent=0
    _
  %s7 = ssub.s32 1, %s5
  %s8 = scalar_select 0, %s7, %s5
  $region1: #{tpu_custom_call.1} parent=0
    #allocation2 [shape = 'u8[16384]{0}', space=vmem, size = 0x4000, scoped, tag = 'input window, operand 0, single buffered']
    #allocation3 [shape = 's32[1]{0}', space=sflag, size = 0x4, scoped, tag = 'scoped memory for tpu_custom_call.1']
    #allocation4 [shape = 's32[1]{0}', space=sflag, size = 0x4, scoped, tag = 'scoped memory for tpu_custom_call.1']
    #allocation5 [shape = 'u8[16384]{0}', space=vmem, size = 0x4000, scoped, tag = 'input window, operand 1, single buffered']
    #allocation6 [shape = 's32[1]{0}', space=sflag, size = 0x4, scoped, tag = 'scoped memory for tpu_custom_call.1']
    #allocation7 [shape = 'u8[32768]{0}', space=vmem, size = 0x8000, scoped, tag = 'input window, operand 2, single buffered']
    #allocation8 [shape = 'u8[32768]{0}', space=vmem, size = 0x8000, scoped, tag = 'input window, operand 3, single buffered']
    #allocation9 [shape = 's32[1]{0}', space=sflag, size = 0x4, scoped, tag = 'scoped memory for tpu_custom_call.1']
    #allocation10 [shape = 'u8[16384]{0}', space=vmem, size = 0x4000, scoped, tag = 'output window, operand 0, single buffered']
    %9 = vsyncpa [#allocation3], 0
    %10 = vsyncpa [#allocation6], 0
    %11 = vsyncpa [#allocation9], 0
    %12 = vsyncpa [#allocation4], 0
    // Predicated region
    $region2: #{tpu_custom_call.1} parent=1 // pred_check
      _
    $region3: #{tpu_custom_call.1} parent=1 // pred_check_branch
      %14 = sbr.rel (0) target = $region5
    $region4: #{tpu_custom_call.1} parent=1 // pred_region
      %16 = vsyncadd [#allocation3], 0
      %s17 = sshll.u32 %s0, 4
      %s18 = int_to_ptr.hbm [resolvable:$true] %s17
      %s19 = sshll.u32 [#allocation2], 4
      %s20 = int_to_ptr.vmem [resolvable:$true] %s19
      %25 = dma.hbm_to_vmem [thread:$0]  %s18, 512, %s20, [#allocation3], 128, 128, 8
    $region5: #{tpu_custom_call.1} parent=1 // pred_fallthru
      _
    // Predicated region
    $region6: #{tpu_custom_call.1} parent=1 // pred_check
      _
    $region7: #{tpu_custom_call.1} parent=1 // pred_check_branch
      %27 = sbr.rel (0) target = $region9
    $region8: #{tpu_custom_call.1} parent=1 // pred_region
      %29 = vsyncadd [#allocation6], 0
      %s30 = sshll.u32 %s1, 4
      %s31 = int_to_ptr.hbm [resolvable:$true] %s30
      %s32 = sshll.u32 [#allocation5], 4
      %s33 = int_to_ptr.vmem [resolvable:$true] %s32
      %38 = dma.hbm_to_vmem [thread:$0]  %s31, 512, %s33, [#allocation6], 128, 128, 8
    $region9: #{tpu_custom_call.1} parent=1 // pred_fallthru
      _
    // Predicated region
    $region10: #{tpu_custom_call.1} parent=1 // pred_check
      _
    $region11: #{tpu_custom_call.1} parent=1 // pred_check_branch
      %40 = sbr.rel (0) target = $region13
    $region12: #{tpu_custom_call.1} parent=1 // pred_region
      %42 = vsyncadd [#allocation6], 0
      %s43 = sshll.u32 %s2, 4
      %s44 = int_to_ptr.hbm [resolvable:$true] %s43
      %s45 = sshll.u32 [#allocation7], 4
      %s46 = int_to_ptr.vmem [resolvable:$true] %s45
      %51 = dma.hbm_to_vmem [thread:$0]  %s44, 1024, %s46, [#allocation6], 64, 64, 4
    $region13: #{tpu_custom_call.1} parent=1 // pred_fallthru
      _
    // Predicated region
    $region14: #{tpu_custom_call.1} parent=1 // pred_check
      _
    $region15: #{tpu_custom_call.1} parent=1 // pred_check_branch
      %53 = sbr.rel (0) target = $region17
    $region16: #{tpu_custom_call.1} parent=1 // pred_region
      %55 = vsyncadd [#allocation9], 0
      %s56 = sshll.u32 %s3, 4
      %s57 = int_to_ptr.hbm [resolvable:$true] %s56
      %s58 = sshll.u32 [#allocation8], 4
      %s59 = int_to_ptr.vmem [resolvable:$true] %s58
      %64 = dma.hbm_to_vmem [thread:$0]  %s57, 1024, %s59, [#allocation9], 64, 64, 4
    $region17: #{tpu_custom_call.1} parent=1 // pred_fallthru
      _
    // Predicated region
    $region18: #{tpu_custom_call.1} parent=1 // pred_check
      _
    $region19: #{tpu_custom_call.1} parent=1 // pred_check_branch
      %66 = sbr.rel (0) target = $region21
    $region20: #{tpu_custom_call.1} parent=1 // pred_region
      %68 = dma.done [#allocation3], 512
    $region21: #{tpu_custom_call.1} parent=1 // pred_fallthru
      _
    // Predicated region
    $region22: #{tpu_custom_call.1} parent=1 // pred_check
      _
    $region23: #{tpu_custom_call.1} parent=1 // pred_check_branch
      %70 = sbr.rel (0) target = $region25
    $region24: #{tpu_custom_call.1} parent=1 // pred_region
      %72 = dma.done [#allocation6], 512
    $region25: #{tpu_custom_call.1} parent=1 // pred_fallthru
      _
    // Predicated region
    $region26: #{tpu_custom_call.1} parent=1 // pred_check
      _
    $region27: #{tpu_custom_call.1} parent=1 // pred_check_branch
      %74 = sbr.rel (0) target = $region29
    $region28: #{tpu_custom_call.1} parent=1 // pred_region
      %76 = dma.done [#allocation6], 1024
    $region29: #{tpu_custom_call.1} parent=1 // pred_fallthru
      _
    // Predicated region
    $region30: #{tpu_custom_call.1} parent=1 // pred_check
      _
    $region31: #{tpu_custom_call.1} parent=1 // pred_check_branch
      %78 = sbr.rel (0) target = $region33
    $region32: #{tpu_custom_call.1} parent=1 // pred_region
      %80 = dma.done [#allocation9], 1024
    $region33: #{tpu_custom_call.1} parent=1 // pred_fallthru
      _
    %v81 = vld [vmem:[#allocation2] sm:$0xff]
    %v82 = vld [vmem:[#allocation2 + $0x8] sm:$0xff]
    %v83 = vld [vmem:[#allocation2 + $0x10] sm:$0xff]
    %v84 = vld [vmem:[#allocation2 + $0x18] sm:$0xff]
    %v85 = vpack.c.bf16 %v82, %v81
    %v86 = vpack.c.bf16 %v84, %v83
    %v87 = vld [vmem:[#allocation7] sm:$0xf]
    %v88 = vld [vmem:[#allocation7 + $0x4] sm:$0xf]
    %v89 = vld [vmem:[#allocation7 + $0x8] sm:$0xf]
    %v90 = vld [vmem:[#allocation7 + $0xc] sm:$0xf]
    %v91 = vld [vmem:[#allocation7 + $0x10] sm:$0xf]
    %v92 = vld [vmem:[#allocation7 + $0x14] sm:$0xf]
    %v93 = vld [vmem:[#allocation7 + $0x18] sm:$0xf]
    %v94 = vld [vmem:[#allocation7 + $0x1c] sm:$0xf]
    %v95 = vld [vmem:[#allocation7 + $0x20] sm:$0xf]
    %v96 = vld [vmem:[#allocation7 + $0x24] sm:$0xf]
    %v97 = vld [vmem:[#allocation7 + $0x28] sm:$0xf]
    %v98 = vld [vmem:[#allocation7 + $0x2c] sm:$0xf]
    %v99 = vld [vmem:[#allocation7 + $0x30] sm:$0xf]
    %v100 = vld [vmem:[#allocation7 + $0x34] sm:$0xf]
    %v101 = vld [vmem:[#allocation7 + $0x38] sm:$0xf]
    %v102 = vld [vmem:[#allocation7 + $0x3c] sm:$0xf]
    %v119 = vunpack.c.l.b16 %v87
    %v120 = vunpack.c.l.b16 %v88
    %v121 = vunpack.c.l.b16 %v89
    %v122 = vunpack.c.l.b16 %v90
    %v123 = vunpack.c.l.b16 %v91
    %v124 = vunpack.c.l.b16 %v92
    %v125 = vunpack.c.l.b16 %v93
    %v126 = vunpack.c.l.b16 %v94
    %v127 = vunpack.c.l.b16 %v95
    %v128 = vunpack.c.l.b16 %v96
    %v129 = vunpack.c.l.b16 %v97
    %v130 = vunpack.c.l.b16 %v98
    %v131 = vunpack.c.l.b16 %v99
    %v132 = vunpack.c.l.b16 %v100
    %v133 = vunpack.c.l.b16 %v101
    %v134 = vunpack.c.l.b16 %v102
    %v135 = vpack.c.b16 %v120, %v119
    %v136 = vpack.c.b16 %v122, %v121
    %v137 = vpack.c.b16 %v124, %v123
    %v138 = vpack.c.b16 %v126, %v125
    %v139 = vpack.c.b16 %v128, %v127
    %v140 = vpack.c.b16 %v130, %v129
    %v141 = vpack.c.b16 %v132, %v131
    %v142 = vpack.c.b16 %v134, %v133
    %151 = vmatpush.bf16.msra.mxu0 %v142
    %152 = vmatpush.bf16.msra.mxu0 %v141
    %153 = vmatpush.bf16.msra.mxu0 %v140
    %154 = vmatpush.bf16.msra.mxu0 %v139
    %155 = vmatpush.bf16.msra.mxu0 %v138
    %156 = vmatpush.bf16.msra.mxu0 %v137
    %157 = vmatpush.bf16.msra.mxu0 %v136
    %158 = vmatpush.bf16.msra.mxu0 %v135
    %159 = vmatmul.bf16.gmra.mxu0 %v85
    %v160 = vpop.f32.mrf.mxu0
    %v161 = vadd.f32 0.0, %v160
    %v162 = vpop.f32.mrf.mxu0
    %v163 = vadd.f32 0.0, %v162
    %164 = vmatmul.bf16.gmra.mxu0 %v86
    %v165 = vpop.f32.mrf.mxu0
    %v166 = vadd.f32 0.0, %v165
    %v167 = vpop.f32.mrf.mxu0
    %v168 = vadd.f32 0.0, %v167
    %169 = vdwg.mxu0
    %v170 = vld [vmem:[#allocation5] sm:$0xff]
    %v171 = vld [vmem:[#allocation5 + $0x8] sm:$0xff]
    %v172 = vld [vmem:[#allocation5 + $0x10] sm:$0xff]
    %v173 = vld [vmem:[#allocation5 + $0x18] sm:$0xff]
    %v174 = vmul.f32 %v161, %v170
    %v175 = vmul.f32 %v163, %v171
    %v176 = vmul.f32 %v166, %v172
    %v177 = vmul.f32 %v168, %v173
    %v178 = vpack.c.bf16 %v175, %v174
    %v179 = vpack.c.bf16 %v177, %v176
    %v180 = vld [vmem:[#allocation8] sm:$0xf]
    %v181 = vld [vmem:[#allocation8 + $0x4] sm:$0xf]
    %v182 = vld [vmem:[#allocation8 + $0x8] sm:$0xf]
    %v183 = vld [vmem:[#allocation8 + $0xc] sm:$0xf]
    %v184 = vld [vmem:[#allocation8 + $0x10] sm:$0xf]
    %v185 = vld [vmem:[#allocation8 + $0x14] sm:$0xf]
    %v186 = vld [vmem:[#allocation8 + $0x18] sm:$0xf]
    %v187 = vld [vmem:[#allocation8 + $0x1c] sm:$0xf]
    %v188 = vld [vmem:[#allocation8 + $0x20] sm:$0xf]
    %v189 = vld [vmem:[#allocation8 + $0x24] sm:$0xf]
    %v190 = vld [vmem:[#allocation8 + $0x28] sm:$0xf]
    %v191 = vld [vmem:[#allocation8 + $0x2c] sm:$0xf]
    %v192 = vld [vmem:[#allocation8 + $0x30] sm:$0xf]
    %v193 = vld [vmem:[#allocation8 + $0x34] sm:$0xf]
    %v194 = vld [vmem:[#allocation8 + $0x38] sm:$0xf]
    %v195 = vld [vmem:[#allocation8 + $0x3c] sm:$0xf]
    %v212 = vunpack.c.l.b16 %v180
    %v213 = vunpack.c.l.b16 %v181
    %v214 = vunpack.c.l.b16 %v182
    %v215 = vunpack.c.l.b16 %v183
    %v216 = vunpack.c.l.b16 %v184
    %v217 = vunpack.c.l.b16 %v185
    %v218 = vunpack.c.l.b16 %v186
    %v219 = vunpack.c.l.b16 %v187
    %v220 = vunpack.c.l.b16 %v188
    %v221 = vunpack.c.l.b16 %v189
    %v222 = vunpack.c.l.b16 %v190
    %v223 = vunpack.c.l.b16 %v191
    %v224 = vunpack.c.l.b16 %v192
    %v225 = vunpack.c.l.b16 %v193
    %v226 = vunpack.c.l.b16 %v194
    %v227 = vunpack.c.l.b16 %v195
    %v228 = vpack.c.b16 %v213, %v212
    %v229 = vpack.c.b16 %v215, %v214
    %v230 = vpack.c.b16 %v217, %v216
    %v231 = vpack.c.b16 %v219, %v218
    %v232 = vpack.c.b16 %v221, %v220
    %v233 = vpack.c.b16 %v223, %v222
    %v234 = vpack.c.b16 %v225, %v224
    %v235 = vpack.c.b16 %v227, %v226
    %244 = vmatpush.bf16.msra.mxu0 %v235
    %245 = vmatpush.bf16.msra.mxu0 %v234
    %246 = vmatpush.bf16.msra.mxu0 %v233
    %247 = vmatpush.bf16.msra.mxu0 %v232
    %248 = vmatpush.bf16.msra.mxu0 %v231
    %249 = vmatpush.bf16.msra.mxu0 %v230
    %250 = vmatpush.bf16.msra.mxu0 %v229
    %251 = vmatpush.bf16.msra.mxu0 %v228
    %252 = vmatmul.bf16.gmra.mxu0 %v178
    %v253 = vpop.f32.mrf.mxu0
    %v254 = vadd.f32 0.0, %v253
    %v255 = vpop.f32.mrf.mxu0
    %v256 = vadd.f32 0.0, %v255
    %257 = vmatmul.bf16.gmra.mxu0 %v179
    %v258 = vpop.f32.mrf.mxu0
    %v259 = vadd.f32 0.0, %v258
    %v260 = vpop.f32.mrf.mxu0
    %v261 = vadd.f32 0.0, %v260
    %262 = vdwg.mxu0
    %263 = vst [vmem:[#allocation10] sm:$0xff] %v254
    %264 = vst [vmem:[#allocation10 + $0x8] sm:$0xff] %v256
    %265 = vst [vmem:[#allocation10 + $0x10] sm:$0xff] %v259
    %266 = vst [vmem:[#allocation10 + $0x18] sm:$0xff] %v261
    // Predicated region
    $region34: #{tpu_custom_call.1} parent=1 // pred_check
      _
    $region35: #{tpu_custom_call.1} parent=1 // pred_check_branch
      %268 = sbr.rel (0) target = $region37
    $region36: #{tpu_custom_call.1} parent=1 // pred_region
      %270 = vsyncadd [#allocation4], 0
      %s271 = sshll.u32 [#allocation10], 4
      %s272 = int_to_ptr.vmem [resolvable:$true] %s271
      %s273 = sshll.u32 %s4, 4
      %s274 = int_to_ptr.hbm [resolvable:$true] %s273
      %279 = dma.vmem_to_hbm [thread:$0]  %s272, 512, %s274, [#allocation4], 128, 128, 8
    $region37: #{tpu_custom_call.1} parent=1 // pred_fallthru
      _
    // Predicated region
    $region38: #{tpu_custom_call.1} parent=1 // pred_check
      _
    $region39: #{tpu_custom_call.1} parent=1 // pred_check_branch
      %281 = sbr.rel (0) target = $region41
    $region40: #{tpu_custom_call.1} parent=1 // pred_region
      %283 = dma.done [#allocation4], 512
    $region41: #{tpu_custom_call.1} parent=1 // pred_fallthru
      _
    %284 = vsyncpa [#allocation3], 1
    %285 = vsyncpa [#allocation6], 1
    %286 = vsyncpa [#allocation9], 1
    %287 = vsyncpa [#allocation4], 1

</llo_original>
